<compile_context>
chip_gen: v5e
topology: v5e:2x2
jax: 0.10.0
libtpu: 0.0.40
codegen_flags: <defaults>
</compile_context>

<pallas_src>
import math

import numpy as np
import jax
import jax.numpy as jnp
from jax.experimental import pallas as pl
from jax.experimental.pallas import tpu as pltpu


# ----------------------------------------------------------------------------
# Diffusion schedule buffers (numpy float64, cast to f32 -- matches torch init)
# ----------------------------------------------------------------------------
def cosine_beta_schedule(timesteps, s=0.008):
    steps = timesteps + 1
    x = np.linspace(0, timesteps, steps, dtype=np.float64)
    alphas_cumprod = np.cos((x / timesteps + s) / (1 + s) * math.pi * 0.5) ** 2
    alphas_cumprod = alphas_cumprod / alphas_cumprod[0]
    betas = 1.0 - alphas_cumprod[1:] / alphas_cumprod[:-1]
    return np.clip(betas, 0.0, 0.999)


def make_diffusion_buffers(timesteps=100):
    betas = cosine_beta_schedule(timesteps)
    alphas = 1.0 - betas
    alphas_cumprod = np.cumprod(alphas, axis=0)
    return {
        "alphas_cumprod": jnp.asarray(alphas_cumprod, jnp.float32),
        "sqrt_alphas_cumprod": jnp.asarray(np.sqrt(alphas_cumprod), jnp.float32),
        "sqrt_one_minus_alphas_cumprod": jnp.asarray(
            np.sqrt(1.0 - alphas_cumprod), jnp.float32
        ),
    }


# ----------------------------------------------------------------------------
# Pallas kernel: batch-block q_sample + linear denoiser + L1 loss * loss_coef
# ----------------------------------------------------------------------------
def p_losses_kernel(
    scal_ref,   # VMEM (bb, 1, 4) f32: [sqrt_ac, sqrt_1m_ac, loss_coef, t/T]
    x0_ref,     # VMEM (bb, P, C3)    clean 3d pose (target / x_start)
    nz_ref,     # VMEM (bb, P, C3)    gaussian noise
    p2_ref,     # VMEM (bb, F, P, C2) 2d condition pose, native layout
    w2_ref,     # VMEM (F, C2, C3)    per-frame denoiser weights, 2d branch
    w3_ref,     # VMEM (1, C3, C3)    denoiser weights, noisy-3d branch
    b_ref,      # VMEM (1, 1, C3)     denoiser bias
    loss_ref,   # VMEM (bb, P, C3)    output loss (reduction='none')
):
    F = p2_ref.shape[1]
    C2 = p2_ref.shape[3]
    C3 = x0_ref.shape[2]

    scal = scal_ref[...]                         # (bb, 1, 4)
    sqrt_ac = scal[:, :, 0:1]                    # (bb, 1, 1)
    sqrt_1m_ac = scal[:, :, 1:2]
    loss_coef = scal[:, :, 2:3]
    t_feat = scal[:, :, 3:4]

    x0 = x0_ref[...]                             # (bb, P, C3)

    # q_sample: x_noisy = sqrt(ac[t]) * x0 + sqrt(1 - ac[t]) * noise
    x_noisy = sqrt_ac * x0 + sqrt_1m_ac * nz_ref[...]

    w2 = w2_ref[...]                             # (F, C2, C3)
    w3 = w3_ref[...]                             # (1, C3, C3)

    # Synthetic linear denoiser over cat([pose_2d, x_noisy.repeat(f)], -1):
    # x_noisy is identical per frame, so its per-frame weights collapse to one
    # (C3, C3) matrix; contraction done as VPU broadcast MACs (channel dims of
    # width 2/3 would only waste the MXU and force relayouts).
    out = b_ref[...] + t_feat                    # (1,1,C3)+(bb,1,1) -> (bb,1,C3)

    for c in range(C3):                          # noisy-3d branch
        out = out + x_noisy[:, :, c:c + 1] * w3[:, c:c + 1, :]

    for f in range(F):                           # 2d condition branch (native layout)
        p2_f = p2_ref[:, f:f + 1, :, :][:, 0]    # static slice + value squeeze -> (bb, P, C2)
        for c in range(C2):
            out = out + p2_f[:, :, c:c + 1] * w2[f:f + 1, c:c + 1, :]

    # l1 loss (reduction='none') scaled by the per-batch loss coefficient
    loss_ref[...] = (jnp.abs(out - x0) * loss_coef).astype(loss_ref.dtype)


def _pick_block_batches(B, P, target_rows=1024):
    """Largest divisor of B with bb * P <= target_rows (>= 1)."""
    bb = max(1, min(B, target_rows // max(P, 1)))
    while B % bb != 0:
        bb -= 1
    return bb


def p_losses_pallas(x0, noise, pose_2d, scal, w2, w3, bias, *, block_batches=None):
    """x0, noise: (B, P, C3); pose_2d: (B, F, P, C2) native; scal: (B, 1, 4)."""
    B, P, C3 = x0.shape
    _, F, _, C2 = pose_2d.shape

    bb = block_batches if block_batches is not None else _pick_block_batches(B, P)
    grid = (B // bb,)

    return pl.pallas_call(
        p_losses_kernel,
        out_shape=jax.ShapeDtypeStruct((B, P, C3), jnp.float32),
        grid=grid,
        in_specs=[
            pl.BlockSpec((bb, 1, 4), lambda i: (i, 0, 0)),          # per-batch scalars
            pl.BlockSpec((bb, P, C3), lambda i: (i, 0, 0)),         # x0
            pl.BlockSpec((bb, P, C3), lambda i: (i, 0, 0)),         # noise
            pl.BlockSpec((bb, F, P, C2), lambda i: (i, 0, 0, 0)),   # pose_2d (native)
            pl.BlockSpec((F, C2, C3), lambda i: (0, 0, 0)),         # w2 (resident)
            pl.BlockSpec((1, C3, C3), lambda i: (0, 0, 0)),         # w3 (resident)
            pl.BlockSpec((1, 1, C3), lambda i: (0, 0, 0)),          # bias (resident)
        ],
        out_specs=pl.BlockSpec((bb, P, C3), lambda i: (i, 0, 0)),
        compiler_params=pltpu.CompilerParams(
            dimension_semantics=("parallel",)                       # v7x: share blocks over 2 TCs
        ),
    )(scal, x0, noise, pose_2d, w2, w3, bias)


# ----------------------------------------------------------------------------
# GaussianDiffusion training forward (p_losses) — glue around the kernel
# ----------------------------------------------------------------------------
class GaussianDiffusionPallas:
    def __init__(self, timesteps=100, key=None, f=8, c2=2, c3=3):
        self.num_timesteps = timesteps
        self.buf = make_diffusion_buffers(timesteps)
        k1, k2, k3 = jax.random.split(key, 3)
        # synthetic linear denoiser standing in for the external model.forward_denoise
        self.w2 = 0.05 * jax.random.normal(k1, (f, c2, c3), jnp.float32)     # per-frame 2d weights
        self.w3 = 0.05 * jax.random.normal(k2, (1, c3, c3), jnp.float32)     # noisy-3d weights
        self.bias = 0.05 * jax.random.normal(k3, (1, 1, c3), jnp.float32)

    def forward_train(self, clean_3d_pose, noisy_2d_pose, noise, t):
        """clean_3d_pose: (B,1,P,3); noisy_2d_pose: (B,F,P,2); noise: (B,1,P,3);
        t: (B,) int32.  Returns (loss_pose (B,1,P,3), None) like the torch
        module in training mode."""
        B, F, P, C2 = noisy_2d_pose.shape
        C3 = clean_3d_pose.shape[-1]

        # per-batch scalars gathered from the schedule buffers (glue, tiny)
        sqrt_ac = self.buf["sqrt_alphas_cumprod"][t]
        sqrt_1m_ac = self.buf["sqrt_one_minus_alphas_cumprod"][t]
        ac = self.buf["alphas_cumprod"][t]
        loss_coef = 1.0 + ac / sqrt_1m_ac                 # clipLoss=False branch
        t_feat = t.astype(jnp.float32) / self.num_timesteps
        scal = jnp.stack([sqrt_ac, sqrt_1m_ac, loss_coef, t_feat], axis=-1)
        scal = scal.reshape(B, 1, 4)

        # free contiguous reshapes only (drop singleton frame dim); NO transposes.
        x0 = clean_3d_pose.reshape(B, P, C3)
        nz = noise.reshape(B, P, C3)

        loss = p_losses_pallas(x0, nz, noisy_2d_pose, scal,
                               self.w2, self.w3, self.bias)
        return loss.reshape(B, 1, P, C3), None

    # pure-JAX reference (for validation)
    def forward_train_ref(self, clean_3d_pose, noisy_2d_pose, noise, t):
        B, F, P, C2 = noisy_2d_pose.shape
        sqrt_ac = self.buf["sqrt_alphas_cumprod"][t].reshape(B, 1, 1, 1)
        sqrt_1m_ac = self.buf["sqrt_one_minus_alphas_cumprod"][t].reshape(B, 1, 1, 1)
        ac = self.buf["alphas_cumprod"][t].reshape(B, 1, 1, 1)
        loss_coef = 1.0 + ac / sqrt_1m_ac
        t_feat = (t.astype(jnp.float32) / self.num_timesteps).reshape(B, 1, 1, 1)

        x_noisy = sqrt_ac * clean_3d_pose + sqrt_1m_ac * noise        # (B,1,P,3)
        out = (
            jnp.einsum("bfpc,fco->bpo", noisy_2d_pose, self.w2)
            + jnp.einsum("bpc,co->bpo", x_noisy[:, 0], self.w3[0])
            + self.bias[0, 0]
        )[:, None] + t_feat
        loss = jnp.abs(out - clean_3d_pose) * loss_coef
        return loss, None


# ----------------------------------------------------------------------------
if __name__ == "__main__":
    key = jax.random.PRNGKey(0)
    k_model, k_x3d, k_x2d, k_noise, k_t = jax.random.split(key, 5)

    B, F, P, C2, C3 = 2, 8, 16, 2, 3
    T = 100

    diffusion = GaussianDiffusionPallas(timesteps=T, key=k_model, f=F, c2=C2, c3=C3)

    clean_3d_pose = jax.random.normal(k_x3d, (B, 1, P, C3), jnp.float32)
    noisy_2d_pose = jax.random.normal(k_x2d, (B, F, P, C2), jnp.float32)
    noise = jax.random.normal(k_noise, (B, 1, P, C3), jnp.float32)
    t = jax.random.randint(k_t, (B,), 0, T, dtype=jnp.int32)

    loss_pallas, pred = diffusion.forward_train(clean_3d_pose, noisy_2d_pose, noise, t)
    loss_pallas = jax.block_until_ready(loss_pallas)

    loss_ref, _ = diffusion.forward_train_ref(clean_3d_pose, noisy_2d_pose, noise, t)
    loss_ref = jax.block_until_ready(loss_ref)

    assert loss_pallas.shape == (B, 1, P, C3)
    assert pred is None
    np.testing.assert_allclose(
        np.asarray(loss_pallas), np.asarray(loss_ref), rtol=1e-4, atol=1e-5
    )

    # TODO(synk): sampling paths (p_sample_loop / ddim_sample_loop) iterate the
    # external denoiser network over timesteps; only the training forward
    # (p_losses) hot path is implemented as a Pallas kernel here.
    print("KERNEL_OK")
</pallas_src>

<mosaic_0001>
module attributes {stable_mosaic.version = 11 : i64} {
  func.func @p_losses_kernel(%arg0: i32, %arg1: memref<2x1x4xf32, #tpu.memory_space<vmem>>, %arg2: memref<2x16x3xf32, #tpu.memory_space<vmem>>, %arg3: memref<2x16x3xf32, #tpu.memory_space<vmem>>, %arg4: memref<2x8x16x2xf32, #tpu.memory_space<vmem>>, %arg5: memref<8x2x3xf32, #tpu.memory_space<vmem>>, %arg6: memref<1x3x3xf32, #tpu.memory_space<vmem>>, %arg7: memref<1x1x3xf32, #tpu.memory_space<vmem>>, %arg8: memref<2x16x3xf32, #tpu.memory_space<vmem>>) attributes {dimension_semantics = [#tpu.dimension_semantics<parallel>], iteration_bounds = array<i64: 1>, scalar_prefetch = 0 : i64, scratch_operands = 0 : i64, tpu.core_type = #tpu.core_type<tc>, window_params = [{transform_indices = @transform_0, window_bounds = array<i64: 2, 1, 4>}, {transform_indices = @transform_1, window_bounds = array<i64: 2, 16, 3>}, {transform_indices = @transform_2, window_bounds = array<i64: 2, 16, 3>}, {transform_indices = @transform_3, window_bounds = array<i64: 2, 8, 16, 2>}, {pipeline_mode = #tpu.pipeline_mode<synchronous>, transform_indices = @transform_4, window_bounds = array<i64: 8, 2, 3>}, {pipeline_mode = #tpu.pipeline_mode<synchronous>, transform_indices = @transform_5, window_bounds = array<i64: 1, 3, 3>}, {pipeline_mode = #tpu.pipeline_mode<synchronous>, transform_indices = @transform_6, window_bounds = array<i64: 1, 1, 3>}, {transform_indices = @transform_7, window_bounds = array<i64: 2, 16, 3>}]} {
    %c0 = arith.constant 0 : index
    %c0_0 = arith.constant 0 : index
    %c0_1 = arith.constant 0 : index
    %0 = vector.load %arg1[%c0, %c0_0, %c0_1] : memref<2x1x4xf32, #tpu.memory_space<vmem>>, vector<2x1x4xf32>
    %1 = vector.extract_strided_slice %0 {offsets = [0, 0, 0], sizes = [2, 1, 1], strides = [1, 1, 1]} : vector<2x1x4xf32> to vector<2x1x1xf32>
    %2 = vector.extract_strided_slice %0 {offsets = [0, 0, 1], sizes = [2, 1, 1], strides = [1, 1, 1]} : vector<2x1x4xf32> to vector<2x1x1xf32>
    %3 = vector.extract_strided_slice %0 {offsets = [0, 0, 2], sizes = [2, 1, 1], strides = [1, 1, 1]} : vector<2x1x4xf32> to vector<2x1x1xf32>
    %4 = vector.extract_strided_slice %0 {offsets = [0, 0, 3], sizes = [2, 1, 1], strides = [1, 1, 1]} : vector<2x1x4xf32> to vector<2x1x1xf32>
    %c0_2 = arith.constant 0 : index
    %c0_3 = arith.constant 0 : index
    %c0_4 = arith.constant 0 : index
    %5 = vector.load %arg2[%c0_2, %c0_3, %c0_4] : memref<2x16x3xf32, #tpu.memory_space<vmem>>, vector<2x16x3xf32>
    %6 = vector.broadcast %1 : vector<2x1x1xf32> to vector<2x16x3xf32>
    %7 = arith.mulf %6, %5 : vector<2x16x3xf32>
    %c0_5 = arith.constant 0 : index
    %c0_6 = arith.constant 0 : index
    %c0_7 = arith.constant 0 : index
    %8 = vector.load %arg3[%c0_5, %c0_6, %c0_7] : memref<2x16x3xf32, #tpu.memory_space<vmem>>, vector<2x16x3xf32>
    %9 = vector.broadcast %2 : vector<2x1x1xf32> to vector<2x16x3xf32>
    %10 = arith.mulf %9, %8 : vector<2x16x3xf32>
    %11 = arith.addf %7, %10 : vector<2x16x3xf32>
    %c0_8 = arith.constant 0 : index
    %c0_9 = arith.constant 0 : index
    %c0_10 = arith.constant 0 : index
    %12 = vector.load %arg5[%c0_8, %c0_9, %c0_10] : memref<8x2x3xf32, #tpu.memory_space<vmem>>, vector<8x2x3xf32>
    %c0_11 = arith.constant 0 : index
    %c0_12 = arith.constant 0 : index
    %c0_13 = arith.constant 0 : index
    %13 = vector.load %arg6[%c0_11, %c0_12, %c0_13] : memref<1x3x3xf32, #tpu.memory_space<vmem>>, vector<1x3x3xf32>
    %c0_14 = arith.constant 0 : index
    %c0_15 = arith.constant 0 : index
    %c0_16 = arith.constant 0 : index
    %14 = vector.load %arg7[%c0_14, %c0_15, %c0_16] : memref<1x1x3xf32, #tpu.memory_space<vmem>>, vector<1x1x3xf32>
    %15 = vector.broadcast %14 : vector<1x1x3xf32> to vector<2x1x3xf32>
    %16 = vector.broadcast %4 : vector<2x1x1xf32> to vector<2x1x3xf32>
    %17 = arith.addf %15, %16 : vector<2x1x3xf32>
    %18 = vector.extract_strided_slice %11 {offsets = [0, 0, 0], sizes = [2, 16, 1], strides = [1, 1, 1]} : vector<2x16x3xf32> to vector<2x16x1xf32>
    %19 = vector.extract_strided_slice %13 {offsets = [0, 0, 0], sizes = [1, 1, 3], strides = [1, 1, 1]} : vector<1x3x3xf32> to vector<1x1x3xf32>
    %20 = vector.broadcast %18 : vector<2x16x1xf32> to vector<2x16x3xf32>
    %21 = vector.broadcast %19 : vector<1x1x3xf32> to vector<2x16x3xf32>
    %22 = arith.mulf %20, %21 : vector<2x16x3xf32>
    %23 = vector.broadcast %17 : vector<2x1x3xf32> to vector<2x16x3xf32>
    %24 = arith.addf %23, %22 : vector<2x16x3xf32>
    %25 = vector.extract_strided_slice %11 {offsets = [0, 0, 1], sizes = [2, 16, 1], strides = [1, 1, 1]} : vector<2x16x3xf32> to vector<2x16x1xf32>
    %26 = vector.extract_strided_slice %13 {offsets = [0, 1, 0], sizes = [1, 1, 3], strides = [1, 1, 1]} : vector<1x3x3xf32> to vector<1x1x3xf32>
    %27 = vector.broadcast %25 : vector<2x16x1xf32> to vector<2x16x3xf32>
    %28 = vector.broadcast %26 : vector<1x1x3xf32> to vector<2x16x3xf32>
    %29 = arith.mulf %27, %28 : vector<2x16x3xf32>
    %30 = arith.addf %24, %29 : vector<2x16x3xf32>
    %31 = vector.extract_strided_slice %11 {offsets = [0, 0, 2], sizes = [2, 16, 1], strides = [1, 1, 1]} : vector<2x16x3xf32> to vector<2x16x1xf32>
    %32 = vector.extract_strided_slice %13 {offsets = [0, 2, 0], sizes = [1, 1, 3], strides = [1, 1, 1]} : vector<1x3x3xf32> to vector<1x1x3xf32>
    %33 = vector.broadcast %31 : vector<2x16x1xf32> to vector<2x16x3xf32>
    %34 = vector.broadcast %32 : vector<1x1x3xf32> to vector<2x16x3xf32>
    %35 = arith.mulf %33, %34 : vector<2x16x3xf32>
    %36 = arith.addf %30, %35 : vector<2x16x3xf32>
    %c0_17 = arith.constant 0 : index
    %c0_18 = arith.constant 0 : index
    %c0_19 = arith.constant 0 : index
    %c0_20 = arith.constant 0 : index
    %37 = vector.load %arg4[%c0_17, %c0_18, %c0_19, %c0_20] : memref<2x8x16x2xf32, #tpu.memory_space<vmem>>, vector<2x1x16x2xf32>
    %38 = vector.shape_cast %37 : vector<2x1x16x2xf32> to vector<2x16x2xf32>
    %39 = vector.extract_strided_slice %38 {offsets = [0, 0, 0], sizes = [2, 16, 1], strides = [1, 1, 1]} : vector<2x16x2xf32> to vector<2x16x1xf32>
    %40 = vector.extract_strided_slice %12 {offsets = [0, 0, 0], sizes = [1, 1, 3], strides = [1, 1, 1]} : vector<8x2x3xf32> to vector<1x1x3xf32>
    %41 = vector.broadcast %39 : vector<2x16x1xf32> to vector<2x16x3xf32>
    %42 = vector.broadcast %40 : vector<1x1x3xf32> to vector<2x16x3xf32>
    %43 = arith.mulf %41, %42 : vector<2x16x3xf32>
    %44 = arith.addf %36, %43 : vector<2x16x3xf32>
    %45 = vector.extract_strided_slice %38 {offsets = [0, 0, 1], sizes = [2, 16, 1], strides = [1, 1, 1]} : vector<2x16x2xf32> to vector<2x16x1xf32>
    %46 = vector.extract_strided_slice %12 {offsets = [0, 1, 0], sizes = [1, 1, 3], strides = [1, 1, 1]} : vector<8x2x3xf32> to vector<1x1x3xf32>
    %47 = vector.broadcast %45 : vector<2x16x1xf32> to vector<2x16x3xf32>
    %48 = vector.broadcast %46 : vector<1x1x3xf32> to vector<2x16x3xf32>
    %49 = arith.mulf %47, %48 : vector<2x16x3xf32>
    %50 = arith.addf %44, %49 : vector<2x16x3xf32>
    %c0_21 = arith.constant 0 : index
    %c1 = arith.constant 1 : index
    %c0_22 = arith.constant 0 : index
    %c0_23 = arith.constant 0 : index
    %51 = vector.load %arg4[%c0_21, %c1, %c0_22, %c0_23] : memref<2x8x16x2xf32, #tpu.memory_space<vmem>>, vector<2x1x16x2xf32>
    %52 = vector.shape_cast %51 : vector<2x1x16x2xf32> to vector<2x16x2xf32>
    %53 = vector.extract_strided_slice %52 {offsets = [0, 0, 0], sizes = [2, 16, 1], strides = [1, 1, 1]} : vector<2x16x2xf32> to vector<2x16x1xf32>
    %54 = vector.extract_strided_slice %12 {offsets = [1, 0, 0], sizes = [1, 1, 3], strides = [1, 1, 1]} : vector<8x2x3xf32> to vector<1x1x3xf32>
    %55 = vector.broadcast %53 : vector<2x16x1xf32> to vector<2x16x3xf32>
    %56 = vector.broadcast %54 : vector<1x1x3xf32> to vector<2x16x3xf32>
    %57 = arith.mulf %55, %56 : vector<2x16x3xf32>
    %58 = arith.addf %50, %57 : vector<2x16x3xf32>
    %59 = vector.extract_strided_slice %52 {offsets = [0, 0, 1], sizes = [2, 16, 1], strides = [1, 1, 1]} : vector<2x16x2xf32> to vector<2x16x1xf32>
    %60 = vector.extract_strided_slice %12 {offsets = [1, 1, 0], sizes = [1, 1, 3], strides = [1, 1, 1]} : vector<8x2x3xf32> to vector<1x1x3xf32>
    %61 = vector.broadcast %59 : vector<2x16x1xf32> to vector<2x16x3xf32>
    %62 = vector.broadcast %60 : vector<1x1x3xf32> to vector<2x16x3xf32>
    %63 = arith.mulf %61, %62 : vector<2x16x3xf32>
    %64 = arith.addf %58, %63 : vector<2x16x3xf32>
    %c0_24 = arith.constant 0 : index
    %c2 = arith.constant 2 : index
    %c0_25 = arith.constant 0 : index
    %c0_26 = arith.constant 0 : index
    %65 = vector.load %arg4[%c0_24, %c2, %c0_25, %c0_26] : memref<2x8x16x2xf32, #tpu.memory_space<vmem>>, vector<2x1x16x2xf32>
    %66 = vector.shape_cast %65 : vector<2x1x16x2xf32> to vector<2x16x2xf32>
    %67 = vector.extract_strided_slice %66 {offsets = [0, 0, 0], sizes = [2, 16, 1], strides = [1, 1, 1]} : vector<2x16x2xf32> to vector<2x16x1xf32>
    %68 = vector.extract_strided_slice %12 {offsets = [2, 0, 0], sizes = [1, 1, 3], strides = [1, 1, 1]} : vector<8x2x3xf32> to vector<1x1x3xf32>
    %69 = vector.broadcast %67 : vector<2x16x1xf32> to vector<2x16x3xf32>
    %70 = vector.broadcast %68 : vector<1x1x3xf32> to vector<2x16x3xf32>
    %71 = arith.mulf %69, %70 : vector<2x16x3xf32>
    %72 = arith.addf %64, %71 : vector<2x16x3xf32>
    %73 = vector.extract_strided_slice %66 {offsets = [0, 0, 1], sizes = [2, 16, 1], strides = [1, 1, 1]} : vector<2x16x2xf32> to vector<2x16x1xf32>
    %74 = vector.extract_strided_slice %12 {offsets = [2, 1, 0], sizes = [1, 1, 3], strides = [1, 1, 1]} : vector<8x2x3xf32> to vector<1x1x3xf32>
    %75 = vector.broadcast %73 : vector<2x16x1xf32> to vector<2x16x3xf32>
    %76 = vector.broadcast %74 : vector<1x1x3xf32> to vector<2x16x3xf32>
    %77 = arith.mulf %75, %76 : vector<2x16x3xf32>
    %78 = arith.addf %72, %77 : vector<2x16x3xf32>
    %c0_27 = arith.constant 0 : index
    %c3 = arith.constant 3 : index
    %c0_28 = arith.constant 0 : index
    %c0_29 = arith.constant 0 : index
    %79 = vector.load %arg4[%c0_27, %c3, %c0_28, %c0_29] : memref<2x8x16x2xf32, #tpu.memory_space<vmem>>, vector<2x1x16x2xf32>
    %80 = vector.shape_cast %79 : vector<2x1x16x2xf32> to vector<2x16x2xf32>
    %81 = vector.extract_strided_slice %80 {offsets = [0, 0, 0], sizes = [2, 16, 1], strides = [1, 1, 1]} : vector<2x16x2xf32> to vector<2x16x1xf32>
    %82 = vector.extract_strided_slice %12 {offsets = [3, 0, 0], sizes = [1, 1, 3], strides = [1, 1, 1]} : vector<8x2x3xf32> to vector<1x1x3xf32>
    %83 = vector.broadcast %81 : vector<2x16x1xf32> to vector<2x16x3xf32>
    %84 = vector.broadcast %82 : vector<1x1x3xf32> to vector<2x16x3xf32>
    %85 = arith.mulf %83, %84 : vector<2x16x3xf32>
    %86 = arith.addf %78, %85 : vector<2x16x3xf32>
    %87 = vector.extract_strided_slice %80 {offsets = [0, 0, 1], sizes = [2, 16, 1], strides = [1, 1, 1]} : vector<2x16x2xf32> to vector<2x16x1xf32>
    %88 = vector.extract_strided_slice %12 {offsets = [3, 1, 0], sizes = [1, 1, 3], strides = [1, 1, 1]} : vector<8x2x3xf32> to vector<1x1x3xf32>
    %89 = vector.broadcast %87 : vector<2x16x1xf32> to vector<2x16x3xf32>
    %90 = vector.broadcast %88 : vector<1x1x3xf32> to vector<2x16x3xf32>
    %91 = arith.mulf %89, %90 : vector<2x16x3xf32>
    %92 = arith.addf %86, %91 : vector<2x16x3xf32>
    %c0_30 = arith.constant 0 : index
    %c4 = arith.constant 4 : index
    %c0_31 = arith.constant 0 : index
    %c0_32 = arith.constant 0 : index
    %93 = vector.load %arg4[%c0_30, %c4, %c0_31, %c0_32] : memref<2x8x16x2xf32, #tpu.memory_space<vmem>>, vector<2x1x16x2xf32>
    %94 = vector.shape_cast %93 : vector<2x1x16x2xf32> to vector<2x16x2xf32>
    %95 = vector.extract_strided_slice %94 {offsets = [0, 0, 0], sizes = [2, 16, 1], strides = [1, 1, 1]} : vector<2x16x2xf32> to vector<2x16x1xf32>
    %96 = vector.extract_strided_slice %12 {offsets = [4, 0, 0], sizes = [1, 1, 3], strides = [1, 1, 1]} : vector<8x2x3xf32> to vector<1x1x3xf32>
    %97 = vector.broadcast %95 : vector<2x16x1xf32> to vector<2x16x3xf32>
    %98 = vector.broadcast %96 : vector<1x1x3xf32> to vector<2x16x3xf32>
    %99 = arith.mulf %97, %98 : vector<2x16x3xf32>
    %100 = arith.addf %92, %99 : vector<2x16x3xf32>
    %101 = vector.extract_strided_slice %94 {offsets = [0, 0, 1], sizes = [2, 16, 1], strides = [1, 1, 1]} : vector<2x16x2xf32> to vector<2x16x1xf32>
    %102 = vector.extract_strided_slice %12 {offsets = [4, 1, 0], sizes = [1, 1, 3], strides = [1, 1, 1]} : vector<8x2x3xf32> to vector<1x1x3xf32>
    %103 = vector.broadcast %101 : vector<2x16x1xf32> to vector<2x16x3xf32>
    %104 = vector.broadcast %102 : vector<1x1x3xf32> to vector<2x16x3xf32>
    %105 = arith.mulf %103, %104 : vector<2x16x3xf32>
    %106 = arith.addf %100, %105 : vector<2x16x3xf32>
    %c0_33 = arith.constant 0 : index
    %c5 = arith.constant 5 : index
    %c0_34 = arith.constant 0 : index
    %c0_35 = arith.constant 0 : index
    %107 = vector.load %arg4[%c0_33, %c5, %c0_34, %c0_35] : memref<2x8x16x2xf32, #tpu.memory_space<vmem>>, vector<2x1x16x2xf32>
    %108 = vector.shape_cast %107 : vector<2x1x16x2xf32> to vector<2x16x2xf32>
    %109 = vector.extract_strided_slice %108 {offsets = [0, 0, 0], sizes = [2, 16, 1], strides = [1, 1, 1]} : vector<2x16x2xf32> to vector<2x16x1xf32>
    %110 = vector.extract_strided_slice %12 {offsets = [5, 0, 0], sizes = [1, 1, 3], strides = [1, 1, 1]} : vector<8x2x3xf32> to vector<1x1x3xf32>
    %111 = vector.broadcast %109 : vector<2x16x1xf32> to vector<2x16x3xf32>
    %112 = vector.broadcast %110 : vector<1x1x3xf32> to vector<2x16x3xf32>
    %113 = arith.mulf %111, %112 : vector<2x16x3xf32>
    %114 = arith.addf %106, %113 : vector<2x16x3xf32>
    %115 = vector.extract_strided_slice %108 {offsets = [0, 0, 1], sizes = [2, 16, 1], strides = [1, 1, 1]} : vector<2x16x2xf32> to vector<2x16x1xf32>
    %116 = vector.extract_strided_slice %12 {offsets = [5, 1, 0], sizes = [1, 1, 3], strides = [1, 1, 1]} : vector<8x2x3xf32> to vector<1x1x3xf32>
    %117 = vector.broadcast %115 : vector<2x16x1xf32> to vector<2x16x3xf32>
    %118 = vector.broadcast %116 : vector<1x1x3xf32> to vector<2x16x3xf32>
    %119 = arith.mulf %117, %118 : vector<2x16x3xf32>
    %120 = arith.addf %114, %119 : vector<2x16x3xf32>
    %c0_36 = arith.constant 0 : index
    %c6 = arith.constant 6 : index
    %c0_37 = arith.constant 0 : index
    %c0_38 = arith.constant 0 : index
    %121 = vector.load %arg4[%c0_36, %c6, %c0_37, %c0_38] : memref<2x8x16x2xf32, #tpu.memory_space<vmem>>, vector<2x1x16x2xf32>
    %122 = vector.shape_cast %121 : vector<2x1x16x2xf32> to vector<2x16x2xf32>
    %123 = vector.extract_strided_slice %122 {offsets = [0, 0, 0], sizes = [2, 16, 1], strides = [1, 1, 1]} : vector<2x16x2xf32> to vector<2x16x1xf32>
    %124 = vector.extract_strided_slice %12 {offsets = [6, 0, 0], sizes = [1, 1, 3], strides = [1, 1, 1]} : vector<8x2x3xf32> to vector<1x1x3xf32>
    %125 = vector.broadcast %123 : vector<2x16x1xf32> to vector<2x16x3xf32>
    %126 = vector.broadcast %124 : vector<1x1x3xf32> to vector<2x16x3xf32>
    %127 = arith.mulf %125, %126 : vector<2x16x3xf32>
    %128 = arith.addf %120, %127 : vector<2x16x3xf32>
    %129 = vector.extract_strided_slice %122 {offsets = [0, 0, 1], sizes = [2, 16, 1], strides = [1, 1, 1]} : vector<2x16x2xf32> to vector<2x16x1xf32>
    %130 = vector.extract_strided_slice %12 {offsets = [6, 1, 0], sizes = [1, 1, 3], strides = [1, 1, 1]} : vector<8x2x3xf32> to vector<1x1x3xf32>
    %131 = vector.broadcast %129 : vector<2x16x1xf32> to vector<2x16x3xf32>
    %132 = vector.broadcast %130 : vector<1x1x3xf32> to vector<2x16x3xf32>
    %133 = arith.mulf %131, %132 : vector<2x16x3xf32>
    %134 = arith.addf %128, %133 : vector<2x16x3xf32>
    %c0_39 = arith.constant 0 : index
    %c7 = arith.constant 7 : index
    %c0_40 = arith.constant 0 : index
    %c0_41 = arith.constant 0 : index
    %135 = vector.load %arg4[%c0_39, %c7, %c0_40, %c0_41] : memref<2x8x16x2xf32, #tpu.memory_space<vmem>>, vector<2x1x16x2xf32>
    %136 = vector.shape_cast %135 : vector<2x1x16x2xf32> to vector<2x16x2xf32>
    %137 = vector.extract_strided_slice %136 {offsets = [0, 0, 0], sizes = [2, 16, 1], strides = [1, 1, 1]} : vector<2x16x2xf32> to vector<2x16x1xf32>
    %138 = vector.extract_strided_slice %12 {offsets = [7, 0, 0], sizes = [1, 1, 3], strides = [1, 1, 1]} : vector<8x2x3xf32> to vector<1x1x3xf32>
    %139 = vector.broadcast %137 : vector<2x16x1xf32> to vector<2x16x3xf32>
    %140 = vector.broadcast %138 : vector<1x1x3xf32> to vector<2x16x3xf32>
    %141 = arith.mulf %139, %140 : vector<2x16x3xf32>
    %142 = arith.addf %134, %141 : vector<2x16x3xf32>
    %143 = vector.extract_strided_slice %136 {offsets = [0, 0, 1], sizes = [2, 16, 1], strides = [1, 1, 1]} : vector<2x16x2xf32> to vector<2x16x1xf32>
    %144 = vector.extract_strided_slice %12 {offsets = [7, 1, 0], sizes = [1, 1, 3], strides = [1, 1, 1]} : vector<8x2x3xf32> to vector<1x1x3xf32>
    %145 = vector.broadcast %143 : vector<2x16x1xf32> to vector<2x16x3xf32>
    %146 = vector.broadcast %144 : vector<1x1x3xf32> to vector<2x16x3xf32>
    %147 = arith.mulf %145, %146 : vector<2x16x3xf32>
    %148 = arith.addf %142, %147 : vector<2x16x3xf32>
    %149 = arith.subf %148, %5 : vector<2x16x3xf32>
    %150 = math.absf %149 : vector<2x16x3xf32>
    %151 = vector.broadcast %3 : vector<2x1x1xf32> to vector<2x16x3xf32>
    %152 = arith.mulf %150, %151 : vector<2x16x3xf32>
    %c0_42 = arith.constant 0 : index
    %c0_43 = arith.constant 0 : index
    %c0_44 = arith.constant 0 : index
    %153 = vector.load %arg8[%c0_42, %c0_43, %c0_44] : memref<2x16x3xf32, #tpu.memory_space<vmem>>, vector<2x16x3xf32>
    tpu.vector_store %arg8[%c0_42, %c0_43, %c0_44], %152 {strides = array<i32>} : memref<2x16x3xf32, #tpu.memory_space<vmem>>, vector<2x16x3xf32>,
    return
  }
  func.func @transform_0(%arg0: i32) -> (i32, i32, i32) {
    %c0_i32 = arith.constant 0 : i32
    %c0_i32_0 = arith.constant 0 : i32
    %c0_i32_1 = arith.constant 0 : i32
    return %arg0, %c0_i32, %c0_i32_0 : i32, i32, i32
  }
  func.func @transform_1(%arg0: i32) -> (i32, i32, i32) {
    %c0_i32 = arith.constant 0 : i32
    %c0_i32_0 = arith.constant 0 : i32
    %c0_i32_1 = arith.constant 0 : i32
    return %arg0, %c0_i32, %c0_i32_0 : i32, i32, i32
  }
  func.func @transform_2(%arg0: i32) -> (i32, i32, i32) {
    %c0_i32 = arith.constant 0 : i32
    %c0_i32_0 = arith.constant 0 : i32
    %c0_i32_1 = arith.constant 0 : i32
    return %arg0, %c0_i32, %c0_i32_0 : i32, i32, i32
  }
  func.func @transform_3(%arg0: i32) -> (i32, i32, i32, i32) {
    %c0_i32 = arith.constant 0 : i32
    %c0_i32_0 = arith.constant 0 : i32
    %c0_i32_1 = arith.constant 0 : i32
    %c0_i32_2 = arith.constant 0 : i32
    return %arg0, %c0_i32, %c0_i32_0, %c0_i32_1 : i32, i32, i32, i32
  }
  func.func @transform_4(%arg0: i32) -> (i32, i32, i32) {
    %c0_i32 = arith.constant 0 : i32
    %c0_i32_0 = arith.constant 0 : i32
    %c0_i32_1 = arith.constant 0 : i32
    %c0_i32_2 = arith.constant 0 : i32
    return %c0_i32, %c0_i32_0, %c0_i32_1 : i32, i32, i32
  }
  func.func @transform_5(%arg0: i32) -> (i32, i32, i32) {
    %c0_i32 = arith.constant 0 : i32
    %c0_i32_0 = arith.constant 0 : i32
    %c0_i32_1 = arith.constant 0 : i32
    %c0_i32_2 = arith.constant 0 : i32
    return %c0_i32, %c0_i32_0, %c0_i32_1 : i32, i32, i32
  }
  func.func @transform_6(%arg0: i32) -> (i32, i32, i32) {
    %c0_i32 = arith.constant 0 : i32
    %c0_i32_0 = arith.constant 0 : i32
    %c0_i32_1 = arith.constant 0 : i32
    %c0_i32_2 = arith.constant 0 : i32
    return %c0_i32, %c0_i32_0, %c0_i32_1 : i32, i32, i32
  }
  func.func @transform_7(%arg0: i32) -> (i32, i32, i32) {
    %c0_i32 = arith.constant 0 : i32
    %c0_i32_0 = arith.constant 0 : i32
    %c0_i32_1 = arith.constant 0 : i32
    return %arg0, %c0_i32, %c0_i32_0 : i32, i32, i32
  }
}

</mosaic_0001>

<llo_original>
// kernel: tpu_custom_call.1
$region0: #{tpu_custom_call.1}
  #allocation0 [shape = 'u32[]', space=smem, size = 0x4, offset = 0x4, fixed_abs, tag = 'smem constant byte address 0x4 - core index']
  #allocation1 [shape = 'u32[72,128]{1,0:T(1,128)}', space=vmem, size = 0x9000, scoped, tag = 'internal scratch']
  %s0 = inlined_call_operand.vmem [shape: f32[2,1,4], index: 0, kind: input, shape index: {}]
  %s1 = inlined_call_operand.vmem [shape: f32[2,16,3], index: 1, kind: input, shape index: {}]
  %s2 = inlined_call_operand.vmem [shape: f32[2,16,3], index: 2, kind: input, shape index: {}]
  %s3 = inlined_call_operand.vmem [shape: f32[2,8,16,2], index: 3, kind: input, shape index: {}]
  %s4 = inlined_call_operand.vmem [shape: f32[8,2,3], index: 4, kind: input, shape index: {}]
  %s5 = inlined_call_operand.vmem [shape: f32[1,3,3], index: 5, kind: input, shape index: {}]
  %s6 = inlined_call_operand.vmem [shape: f32[1,1,3], index: 6, kind: input, shape index: {}]
  %s7 = inlined_call_operand.vmem [shape: f32[2,16,3], index: 7, kind: output, shape index: {}]
  %s8 = sld [smem:[#allocation0]]
  $region38: #{tpu_custom_call.1} parent=0
    _
  %s10 = ssub.s32 1, %s8
  %s11 = scalar_select 0, %s10, %s8
  // Predicated region
  $region2: #{tpu_custom_call.1} parent=0 // pred_check
    _
  $region3: #{tpu_custom_call.1} parent=0 // pred_check_branch
    %13 = sbr.rel (0) target = $region5
  $region4: #{tpu_custom_call.1} parent=0 // pred_region
    _
  $region5: #{tpu_custom_call.1} parent=0 // pred_fallthru
    _
  // Predicated region
  $region6: #{tpu_custom_call.1} parent=0 // pred_check
    _
  $region7: #{tpu_custom_call.1} parent=0 // pred_check_branch
    %15 = sbr.rel (0) target = $region9
  $region8: #{tpu_custom_call.1} parent=0 // pred_region
    _
  $region9: #{tpu_custom_call.1} parent=0 // pred_fallthru
    _
  // Predicated region
  $region10: #{tpu_custom_call.1} parent=0 // pred_check
    _
  $region11: #{tpu_custom_call.1} parent=0 // pred_check_branch
    %17 = sbr.rel (0) target = $region13
  $region12: #{tpu_custom_call.1} parent=0 // pred_region
    _
  $region13: #{tpu_custom_call.1} parent=0 // pred_fallthru
    _
  // Predicated region
  $region14: #{tpu_custom_call.1} parent=0 // pred_check
    _
  $region15: #{tpu_custom_call.1} parent=0 // pred_check_branch
    %19 = sbr.rel (0) target = $region17
  $region16: #{tpu_custom_call.1} parent=0 // pred_region
    _
  $region17: #{tpu_custom_call.1} parent=0 // pred_fallthru
    _
  // Predicated region
  $region18: #{tpu_custom_call.1} parent=0 // pred_check
    _
  $region19: #{tpu_custom_call.1} parent=0 // pred_check_branch
    %21 = sbr.rel (0) target = $region21
  $region20: #{tpu_custom_call.1} parent=0 // pred_region
    _
  $region21: #{tpu_custom_call.1} parent=0 // pred_fallthru
    _
  // Predicated region
  $region22: #{tpu_custom_call.1} parent=0 // pred_check
    _
  $region23: #{tpu_custom_call.1} parent=0 // pred_check_branch
    %23 = sbr.rel (0) target = $region25
  $region24: #{tpu_custom_call.1} parent=0 // pred_region
    _
  $region25: #{tpu_custom_call.1} parent=0 // pred_fallthru
    _
  // Predicated region
  $region26: #{tpu_custom_call.1} parent=0 // pred_check
    _
  $region27: #{tpu_custom_call.1} parent=0 // pred_check_branch
    %25 = sbr.rel (0) target = $region29
  $region28: #{tpu_custom_call.1} parent=0 // pred_region
    _
  $region29: #{tpu_custom_call.1} parent=0 // pred_fallthru
    _
  %v26 = vld [vmem:[%s0] sm:$0x1]
  %v27 = vld [vmem:[%s0 + $0x1] sm:$0x1]
  %v28 = vld [vmem:[%s1] sm:$0xff]
  %v29 = vld [vmem:[%s1 + $0x8] sm:$0xff]
  %v30 = vld [vmem:[%s1 + $0x10] sm:$0xff]
  %v31 = vld [vmem:[%s1 + $0x18] sm:$0xff]
  %v34 = vperm.slane %v26, 0
  %v35 = vperm.slane %v27, 0
  %36 = vset.pattern.permute.xlu0 0
  %37 = vperm.xlu0 %36, %v34
  %v38 = vpop.permute.xlu0 %37
  %40 = vset.pattern.permute.xlu0 0
  %41 = vperm.xlu0 %40, %v35
  %v42 = vpop.permute.xlu0 %41
  %v44 = vmul.f32 %v38, %v28
  %v45 = vmul.f32 %v38, %v29
  %v46 = vmul.f32 %v42, %v30
  %v47 = vmul.f32 %v42, %v31
  %v48 = vld [vmem:[%s2] sm:$0xff]
  %v49 = vld [vmem:[%s2 + $0x8] sm:$0xff]
  %v50 = vld [vmem:[%s2 + $0x10] sm:$0xff]
  %v51 = vld [vmem:[%s2 + $0x18] sm:$0xff]
  %52 = vset.pattern.permute.xlu0 1
  %53 = vperm.xlu0 %52, %v34
  %v54 = vpop.permute.xlu0 %53
  %56 = vset.pattern.permute.xlu0 1
  %57 = vperm.xlu0 %56, %v35
  %v58 = vpop.permute.xlu0 %57
  %v60 = vmul.f32 %v54, %v48
  %v61 = vmul.f32 %v54, %v49
  %v62 = vmul.f32 %v58, %v50
  %v63 = vmul.f32 %v58, %v51
  %v64 = vadd.f32 %v44, %v60
  %v65 = vadd.f32 %v45, %v61
  %v66 = vadd.f32 %v46, %v62
  %v67 = vadd.f32 %v47, %v63
  %v68 = vld [vmem:[%s4] sm:$0x3]
  %v69 = vld [vmem:[%s4 + $0x2] sm:$0x3]
  %v70 = vld [vmem:[%s4 + $0x4] sm:$0x3]
  %v71 = vld [vmem:[%s4 + $0x6] sm:$0x3]
  %v72 = vld [vmem:[%s4 + $0x8] sm:$0x3]
  %v73 = vld [vmem:[%s4 + $0xa] sm:$0x3]
  %v74 = vld [vmem:[%s4 + $0xc] sm:$0x3]
  %v75 = vld [vmem:[%s4 + $0xe] sm:$0x3]
  %v76 = vld [vmem:[%s5] sm:$0x7]
  %v77 = vld [vmem:[%s6] sm:$0x1]
  %78 = vset.pattern.permute.xlu0 3
  %79 = vperm.xlu0 %78, %v26
  %v80 = vpop.permute.xlu0 %79
  %v82 = vperm.slane %v80, 0
  %83 = vset.pattern.permute.xlu0 3
  %84 = vperm.xlu0 %83, %v27
  %v85 = vpop.permute.xlu0 %84
  %v87 = vperm.slane %v85, 0
  %v88 = vadd.f32 %v77, %v82
  %v89 = vadd.f32 %v77, %v87
  %91 = vset.pattern.permute.xlu0 0
  %92 = vperm.xlu0 %91, %v64
  %v93 = vpop.permute.xlu0 %92
  %96 = vset.pattern.permute.xlu0 0
  %97 = vperm.xlu0 %96, %v65
  %v98 = vpop.permute.xlu0 %97
  %101 = vset.pattern.permute.xlu0 0
  %102 = vperm.xlu0 %101, %v66
  %v103 = vpop.permute.xlu0 %102
  %106 = vset.pattern.permute.xlu0 0
  %107 = vperm.xlu0 %106, %v67
  %v108 = vpop.permute.xlu0 %107
  %v110 = vperm.slane %v76, 0
  %v111 = vmul.f32 %v93, %v110
  %v112 = vmul.f32 %v98, %v110
  %v113 = vmul.f32 %v103, %v110
  %v114 = vmul.f32 %v108, %v110
  %v117 = vperm.slane %v88, 0
  %v118 = vperm.slane %v89, 0
  %v121 = vadd.f32 %v117, %v111
  %v122 = vadd.f32 %v117, %v112
  %v123 = vadd.f32 %v118, %v113
  %v124 = vadd.f32 %v118, %v114
  %125 = vset.pattern.permute.xlu0 1
  %126 = vperm.xlu0 %125, %v64
  %v127 = vpop.permute.xlu0 %126
  %129 = vset.pattern.permute.xlu0 1
  %130 = vperm.xlu0 %129, %v65
  %v131 = vpop.permute.xlu0 %130
  %133 = vset.pattern.permute.xlu0 1
  %134 = vperm.xlu0 %133, %v66
  %v135 = vpop.permute.xlu0 %134
  %137 = vset.pattern.permute.xlu0 1
  %138 = vperm.xlu0 %137, %v67
  %v139 = vpop.permute.xlu0 %138
  %v141 = vperm.slane %v76, 1
  %v142 = vmul.f32 %v127, %v141
  %v143 = vmul.f32 %v131, %v141
  %v144 = vmul.f32 %v135, %v141
  %v145 = vmul.f32 %v139, %v141
  %v146 = vadd.f32 %v121, %v142
  %v147 = vadd.f32 %v122, %v143
  %v148 = vadd.f32 %v123, %v144
  %v149 = vadd.f32 %v124, %v145
  %150 = vset.pattern.permute.xlu0 2
  %151 = vperm.xlu0 %150, %v64
  %v152 = vpop.permute.xlu0 %151
  %154 = vset.pattern.permute.xlu0 2
  %155 = vperm.xlu0 %154, %v65
  %v156 = vpop.permute.xlu0 %155
  %158 = vset.pattern.permute.xlu0 2
  %159 = vperm.xlu0 %158, %v66
  %v160 = vpop.permute.xlu0 %159
  %162 = vset.pattern.permute.xlu0 2
  %163 = vperm.xlu0 %162, %v67
  %v164 = vpop.permute.xlu0 %163
  %v166 = vperm.slane %v76, 2
  %v167 = vmul.f32 %v152, %v166
  %v168 = vmul.f32 %v156, %v166
  %v169 = vmul.f32 %v160, %v166
  %v170 = vmul.f32 %v164, %v166
  %v171 = vadd.f32 %v146, %v167
  %v172 = vadd.f32 %v147, %v168
  %v173 = vadd.f32 %v148, %v169
  %v174 = vadd.f32 %v149, %v170
  %v175 = vld [vmem:[%s3] sm:$0xff]
  %v176 = vld [vmem:[%s3 + $0x8] sm:$0xff]
  %v177 = vld [vmem:[%s3 + $0x80] sm:$0xff]
  %v178 = vld [vmem:[%s3 + $0x88] sm:$0xff]
  %180 = vset.pattern.permute.xlu0 0
  %181 = vperm.xlu0 %180, %v175
  %v182 = vpop.permute.xlu0 %181
  %185 = vset.pattern.permute.xlu0 0
  %186 = vperm.xlu0 %185, %v176
  %v187 = vpop.permute.xlu0 %186
  %190 = vset.pattern.permute.xlu0 0
  %191 = vperm.xlu0 %190, %v177
  %v192 = vpop.permute.xlu0 %191
  %195 = vset.pattern.permute.xlu0 0
  %196 = vperm.xlu0 %195, %v178
  %v197 = vpop.permute.xlu0 %196
  %v199 = vperm.slane %v68, 0
  %v200 = vmul.f32 %v182, %v199
  %v201 = vmul.f32 %v187, %v199
  %v202 = vmul.f32 %v192, %v199
  %v203 = vmul.f32 %v197, %v199
  %v204 = vadd.f32 %v171, %v200
  %v205 = vadd.f32 %v172, %v201
  %v206 = vadd.f32 %v173, %v202
  %v207 = vadd.f32 %v174, %v203
  %208 = vset.pattern.permute.xlu0 1
  %209 = vperm.xlu0 %208, %v175
  %v210 = vpop.permute.xlu0 %209
  %212 = vset.pattern.permute.xlu0 1
  %213 = vperm.xlu0 %212, %v176
  %v214 = vpop.permute.xlu0 %213
  %216 = vset.pattern.permute.xlu0 1
  %217 = vperm.xlu0 %216, %v177
  %v218 = vpop.permute.xlu0 %217
  %220 = vset.pattern.permute.xlu0 1
  %221 = vperm.xlu0 %220, %v178
  %v222 = vpop.permute.xlu0 %221
  %v224 = vperm.slane %v68, 1
  %v225 = vmul.f32 %v210, %v224
  %v226 = vmul.f32 %v214, %v224
  %v227 = vmul.f32 %v218, %v224
  %v228 = vmul.f32 %v222, %v224
  %v229 = vadd.f32 %v204, %v225
  %v230 = vadd.f32 %v205, %v226
  %v231 = vadd.f32 %v206, %v227
  %v232 = vadd.f32 %v207, %v228
  %s233 = scalar_lea.vmem %s3, 16
  %v234 = vld [vmem:[%s233] sm:$0xff]
  %v235 = vld [vmem:[%s233 + $0x8] sm:$0xff]
  %v236 = vld [vmem:[%s233 + $0x80] sm:$0xff]
  %v237 = vld [vmem:[%s233 + $0x88] sm:$0xff]
  %239 = vset.pattern.permute.xlu0 0
  %240 = vperm.xlu0 %239, %v234
  %v241 = vpop.permute.xlu0 %240
  %244 = vset.pattern.permute.xlu0 0
  %245 = vperm.xlu0 %244, %v235
  %v246 = vpop.permute.xlu0 %245
  %249 = vset.pattern.permute.xlu0 0
  %250 = vperm.xlu0 %249, %v236
  %v251 = vpop.permute.xlu0 %250
  %254 = vset.pattern.permute.xlu0 0
  %255 = vperm.xlu0 %254, %v237
  %v256 = vpop.permute.xlu0 %255
  %v258 = vperm.slane %v69, 0
  %v259 = vmul.f32 %v241, %v258
  %v260 = vmul.f32 %v246, %v258
  %v261 = vmul.f32 %v251, %v258
  %v262 = vmul.f32 %v256, %v258
  %v263 = vadd.f32 %v229, %v259
  %v264 = vadd.f32 %v230, %v260
  %v265 = vadd.f32 %v231, %v261
  %v266 = vadd.f32 %v232, %v262
  %267 = vset.pattern.permute.xlu0 1
  %268 = vperm.xlu0 %267, %v234
  %v269 = vpop.permute.xlu0 %268
  %271 = vset.pattern.permute.xlu0 1
  %272 = vperm.xlu0 %271, %v235
  %v273 = vpop.permute.xlu0 %272
  %275 = vset.pattern.permute.xlu0 1
  %276 = vperm.xlu0 %275, %v236
  %v277 = vpop.permute.xlu0 %276
  %279 = vset.pattern.permute.xlu0 1
  %280 = vperm.xlu0 %279, %v237
  %v281 = vpop.permute.xlu0 %280
  %v283 = vperm.slane %v69, 1
  %v284 = vmul.f32 %v269, %v283
  %v285 = vmul.f32 %v273, %v283
  %v286 = vmul.f32 %v277, %v283
  %v287 = vmul.f32 %v281, %v283
  %v288 = vadd.f32 %v263, %v284
  %v289 = vadd.f32 %v264, %v285
  %v290 = vadd.f32 %v265, %v286
  %v291 = vadd.f32 %v266, %v287
  %s292 = scalar_lea.vmem %s3, 32
  %v293 = vld [vmem:[%s292] sm:$0xff]
  %v294 = vld [vmem:[%s292 + $0x8] sm:$0xff]
  %v295 = vld [vmem:[%s292 + $0x80] sm:$0xff]
  %v296 = vld [vmem:[%s292 + $0x88] sm:$0xff]
  %298 = vset.pattern.permute.xlu0 0
  %299 = vperm.xlu0 %298, %v293
  %v300 = vpop.permute.xlu0 %299
  %303 = vset.pattern.permute.xlu0 0
  %304 = vperm.xlu0 %303, %v294
  %v305 = vpop.permute.xlu0 %304
  %308 = vset.pattern.permute.xlu0 0
  %309 = vperm.xlu0 %308, %v295
  %v310 = vpop.permute.xlu0 %309
  %313 = vset.pattern.permute.xlu0 0
  %314 = vperm.xlu0 %313, %v296
  %v315 = vpop.permute.xlu0 %314
  %v317 = vperm.slane %v70, 0
  %v318 = vmul.f32 %v300, %v317
  %v319 = vmul.f32 %v305, %v317
  %v320 = vmul.f32 %v310, %v317
  %v321 = vmul.f32 %v315, %v317
  %v322 = vadd.f32 %v288, %v318
  %v323 = vadd.f32 %v289, %v319
  %v324 = vadd.f32 %v290, %v320
  %v325 = vadd.f32 %v291, %v321
  %326 = vset.pattern.permute.xlu0 1
  %327 = vperm.xlu0 %326, %v293
  %v328 = vpop.permute.xlu0 %327
  %330 = vset.pattern.permute.xlu0 1
  %331 = vperm.xlu0 %330, %v294
  %v332 = vpop.permute.xlu0 %331
  %334 = vset.pattern.permute.xlu0 1
  %335 = vperm.xlu0 %334, %v295
  %v336 = vpop.permute.xlu0 %335
  %338 = vset.pattern.permute.xlu0 1
  %339 = vperm.xlu0 %338, %v296
  %v340 = vpop.permute.xlu0 %339
  %v342 = vperm.slane %v70, 1
  %v343 = vmul.f32 %v328, %v342
  %v344 = vmul.f32 %v332, %v342
  %v345 = vmul.f32 %v336, %v342
  %v346 = vmul.f32 %v340, %v342
  %v347 = vadd.f32 %v322, %v343
  %v348 = vadd.f32 %v323, %v344
  %v349 = vadd.f32 %v324, %v345
  %v350 = vadd.f32 %v325, %v346
  %s351 = scalar_lea.vmem %s3, 48
  %v352 = vld [vmem:[%s351] sm:$0xff]
  %v353 = vld [vmem:[%s351 + $0x8] sm:$0xff]
  %v354 = vld [vmem:[%s351 + $0x80] sm:$0xff]
  %v355 = vld [vmem:[%s351 + $0x88] sm:$0xff]
  %357 = vset.pattern.permute.xlu0 0
  %358 = vperm.xlu0 %357, %v352
  %v359 = vpop.permute.xlu0 %358
  %362 = vset.pattern.permute.xlu0 0
  %363 = vperm.xlu0 %362, %v353
  %v364 = vpop.permute.xlu0 %363
  %367 = vset.pattern.permute.xlu0 0
  %368 = vperm.xlu0 %367, %v354
  %v369 = vpop.permute.xlu0 %368
  %372 = vset.pattern.permute.xlu0 0
  %373 = vperm.xlu0 %372, %v355
  %v374 = vpop.permute.xlu0 %373
  %v376 = vperm.slane %v71, 0
  %v377 = vmul.f32 %v359, %v376
  %v378 = vmul.f32 %v364, %v376
  %v379 = vmul.f32 %v369, %v376
  %v380 = vmul.f32 %v374, %v376
  %v381 = vadd.f32 %v347, %v377
  %v382 = vadd.f32 %v348, %v378
  %v383 = vadd.f32 %v349, %v379
  %v384 = vadd.f32 %v350, %v380
  %385 = vset.pattern.permute.xlu0 1
  %386 = vperm.xlu0 %385, %v352
  %v387 = vpop.permute.xlu0 %386
  %389 = vset.pattern.permute.xlu0 1
  %390 = vperm.xlu0 %389, %v353
  %v391 = vpop.permute.xlu0 %390
  %393 = vset.pattern.permute.xlu0 1
  %394 = vperm.xlu0 %393, %v354
  %v395 = vpop.permute.xlu0 %394
  %397 = vset.pattern.permute.xlu0 1
  %398 = vperm.xlu0 %397, %v355
  %v399 = vpop.permute.xlu0 %398
  %v401 = vperm.slane %v71, 1
  %v402 = vmul.f32 %v387, %v401
  %v403 = vmul.f32 %v391, %v401
  %v404 = vmul.f32 %v395, %v401
  %v405 = vmul.f32 %v399, %v401
  %v406 = vadd.f32 %v381, %v402
  %v407 = vadd.f32 %v382, %v403
  %v408 = vadd.f32 %v383, %v404
  %v409 = vadd.f32 %v384, %v405
  %s410 = scalar_lea.vmem %s3, 64
  %v411 = vld [vmem:[%s410] sm:$0xff]
  %v412 = vld [vmem:[%s410 + $0x8] sm:$0xff]
  %v413 = vld [vmem:[%s410 + $0x80] sm:$0xff]
  %v414 = vld [vmem:[%s410 + $0x88] sm:$0xff]
  %416 = vset.pattern.permute.xlu0 0
  %417 = vperm.xlu0 %416, %v411
  %v418 = vpop.permute.xlu0 %417
  %421 = vset.pattern.permute.xlu0 0
  %422 = vperm.xlu0 %421, %v412
  %v423 = vpop.permute.xlu0 %422
  %426 = vset.pattern.permute.xlu0 0
  %427 = vperm.xlu0 %426, %v413
  %v428 = vpop.permute.xlu0 %427
  %431 = vset.pattern.permute.xlu0 0
  %432 = vperm.xlu0 %431, %v414
  %v433 = vpop.permute.xlu0 %432
  %v435 = vperm.slane %v72, 0
  %v436 = vmul.f32 %v418, %v435
  %v437 = vmul.f32 %v423, %v435
  %v438 = vmul.f32 %v428, %v435
  %v439 = vmul.f32 %v433, %v435
  %v440 = vadd.f32 %v406, %v436
  %v441 = vadd.f32 %v407, %v437
  %v442 = vadd.f32 %v408, %v438
  %v443 = vadd.f32 %v409, %v439
  %444 = vset.pattern.permute.xlu0 1
  %445 = vperm.xlu0 %444, %v411
  %v446 = vpop.permute.xlu0 %445
  %448 = vset.pattern.permute.xlu0 1
  %449 = vperm.xlu0 %448, %v412
  %v450 = vpop.permute.xlu0 %449
  %452 = vset.pattern.permute.xlu0 1
  %453 = vperm.xlu0 %452, %v413
  %v454 = vpop.permute.xlu0 %453
  %456 = vset.pattern.permute.xlu0 1
  %457 = vperm.xlu0 %456, %v414
  %v458 = vpop.permute.xlu0 %457
  %v460 = vperm.slane %v72, 1
  %v461 = vmul.f32 %v446, %v460
  %v462 = vmul.f32 %v450, %v460
  %v463 = vmul.f32 %v454, %v460
  %v464 = vmul.f32 %v458, %v460
  %v465 = vadd.f32 %v440, %v461
  %v466 = vadd.f32 %v441, %v462
  %v467 = vadd.f32 %v442, %v463
  %v468 = vadd.f32 %v443, %v464
  %s469 = scalar_lea.vmem %s3, 80
  %v470 = vld [vmem:[%s469] sm:$0xff]
  %v471 = vld [vmem:[%s469 + $0x8] sm:$0xff]
  %v472 = vld [vmem:[%s469 + $0x80] sm:$0xff]
  %v473 = vld [vmem:[%s469 + $0x88] sm:$0xff]
  %475 = vset.pattern.permute.xlu0 0
  %476 = vperm.xlu0 %475, %v470
  %v477 = vpop.permute.xlu0 %476
  %480 = vset.pattern.permute.xlu0 0
  %481 = vperm.xlu0 %480, %v471
  %v482 = vpop.permute.xlu0 %481
  %485 = vset.pattern.permute.xlu0 0
  %486 = vperm.xlu0 %485, %v472
  %v487 = vpop.permute.xlu0 %486
  %490 = vset.pattern.permute.xlu0 0
  %491 = vperm.xlu0 %490, %v473
  %v492 = vpop.permute.xlu0 %491
  %v494 = vperm.slane %v73, 0
  %v495 = vmul.f32 %v477, %v494
  %v496 = vmul.f32 %v482, %v494
  %v497 = vmul.f32 %v487, %v494
  %v498 = vmul.f32 %v492, %v494
  %v499 = vadd.f32 %v465, %v495
  %v500 = vadd.f32 %v466, %v496
  %v501 = vadd.f32 %v467, %v497
  %v502 = vadd.f32 %v468, %v498
  %503 = vset.pattern.permute.xlu0 1
  %504 = vperm.xlu0 %503, %v470
  %v505 = vpop.permute.xlu0 %504
  %507 = vset.pattern.permute.xlu0 1
  %508 = vperm.xlu0 %507, %v471
  %v509 = vpop.permute.xlu0 %508
  %511 = vset.pattern.permute.xlu0 1
  %512 = vperm.xlu0 %511, %v472
  %v513 = vpop.permute.xlu0 %512
  %515 = vset.pattern.permute.xlu0 1
  %516 = vperm.xlu0 %515, %v473
  %v517 = vpop.permute.xlu0 %516
  %v519 = vperm.slane %v73, 1
  %v520 = vmul.f32 %v505, %v519
  %v521 = vmul.f32 %v509, %v519
  %v522 = vmul.f32 %v513, %v519
  %v523 = vmul.f32 %v517, %v519
  %v524 = vadd.f32 %v499, %v520
  %v525 = vadd.f32 %v500, %v521
  %v526 = vadd.f32 %v501, %v522
  %v527 = vadd.f32 %v502, %v523
  %s528 = scalar_lea.vmem %s3, 96
  %v529 = vld [vmem:[%s528] sm:$0xff]
  %v530 = vld [vmem:[%s528 + $0x8] sm:$0xff]
  %v531 = vld [vmem:[%s528 + $0x80] sm:$0xff]
  %v532 = vld [vmem:[%s528 + $0x88] sm:$0xff]
  %534 = vset.pattern.permute.xlu0 0
  %535 = vperm.xlu0 %534, %v529
  %v536 = vpop.permute.xlu0 %535
  %539 = vset.pattern.permute.xlu0 0
  %540 = vperm.xlu0 %539, %v530
  %v541 = vpop.permute.xlu0 %540
  %544 = vset.pattern.permute.xlu0 0
  %545 = vperm.xlu0 %544, %v531
  %v546 = vpop.permute.xlu0 %545
  %549 = vset.pattern.permute.xlu0 0
  %550 = vperm.xlu0 %549, %v532
  %v551 = vpop.permute.xlu0 %550
  %v553 = vperm.slane %v74, 0
  %v554 = vmul.f32 %v536, %v553
  %v555 = vmul.f32 %v541, %v553
  %v556 = vmul.f32 %v546, %v553
  %v557 = vmul.f32 %v551, %v553
  %v558 = vadd.f32 %v524, %v554
  %v559 = vadd.f32 %v525, %v555
  %v560 = vadd.f32 %v526, %v556
  %v561 = vadd.f32 %v527, %v557
  %562 = vset.pattern.permute.xlu0 1
  %563 = vperm.xlu0 %562, %v529
  %v564 = vpop.permute.xlu0 %563
  %566 = vset.pattern.permute.xlu0 1
  %567 = vperm.xlu0 %566, %v530
  %v568 = vpop.permute.xlu0 %567
  %570 = vset.pattern.permute.xlu0 1
  %571 = vperm.xlu0 %570, %v531
  %v572 = vpop.permute.xlu0 %571
  %574 = vset.pattern.permute.xlu0 1
  %575 = vperm.xlu0 %574, %v532
  %v576 = vpop.permute.xlu0 %575
  %v578 = vperm.slane %v74, 1
  %v579 = vmul.f32 %v564, %v578
  %v580 = vmul.f32 %v568, %v578
  %v581 = vmul.f32 %v572, %v578
  %v582 = vmul.f32 %v576, %v578
  %v583 = vadd.f32 %v558, %v579
  %v584 = vadd.f32 %v559, %v580
  %v585 = vadd.f32 %v560, %v581
  %v586 = vadd.f32 %v561, %v582
  %s587 = scalar_lea.vmem %s3, 112
  %v588 = vld [vmem:[%s587] sm:$0xff]
  %v589 = vld [vmem:[%s587 + $0x8] sm:$0xff]
  %v590 = vld [vmem:[%s587 + $0x80] sm:$0xff]
  %v591 = vld [vmem:[%s587 + $0x88] sm:$0xff]
  %593 = vset.pattern.permute.xlu0 0
  %594 = vperm.xlu0 %593, %v588
  %v595 = vpop.permute.xlu0 %594
  %598 = vset.pattern.permute.xlu0 0
  %599 = vperm.xlu0 %598, %v589
  %v600 = vpop.permute.xlu0 %599
  %603 = vset.pattern.permute.xlu0 0
  %604 = vperm.xlu0 %603, %v590
  %v605 = vpop.permute.xlu0 %604
  %608 = vset.pattern.permute.xlu0 0
  %609 = vperm.xlu0 %608, %v591
  %v610 = vpop.permute.xlu0 %609
  %v612 = vperm.slane %v75, 0
  %v613 = vmul.f32 %v595, %v612
  %v614 = vmul.f32 %v600, %v612
  %v615 = vmul.f32 %v605, %v612
  %v616 = vmul.f32 %v610, %v612
  %v617 = vadd.f32 %v583, %v613
  %v618 = vadd.f32 %v584, %v614
  %v619 = vadd.f32 %v585, %v615
  %v620 = vadd.f32 %v586, %v616
  %621 = vset.pattern.permute.xlu0 1
  %622 = vperm.xlu0 %621, %v588
  %v623 = vpop.permute.xlu0 %622
  %625 = vset.pattern.permute.xlu0 1
  %626 = vperm.xlu0 %625, %v589
  %v627 = vpop.permute.xlu0 %626
  %629 = vset.pattern.permute.xlu0 1
  %630 = vperm.xlu0 %629, %v590
  %v631 = vpop.permute.xlu0 %630
  %633 = vset.pattern.permute.xlu0 1
  %634 = vperm.xlu0 %633, %v591
  %v635 = vpop.permute.xlu0 %634
  %v637 = vperm.slane %v75, 1
  %v638 = vmul.f32 %v623, %v637
  %v639 = vmul.f32 %v627, %v637
  %v640 = vmul.f32 %v631, %v637
  %v641 = vmul.f32 %v635, %v637
  %v642 = vadd.f32 %v617, %v638
  %v643 = vadd.f32 %v618, %v639
  %v644 = vadd.f32 %v619, %v640
  %v645 = vadd.f32 %v620, %v641
  %v646 = vsub.f32 %v642, %v28
  %v647 = vsub.f32 %v643, %v29
  %v648 = vsub.f32 %v644, %v30
  %v649 = vsub.f32 %v645, %v31
  %v650 = vand.u32 2147483647, %v646
  %v651 = vand.u32 2147483647, %v647
  %v652 = vand.u32 2147483647, %v648
  %v653 = vand.u32 2147483647, %v649
  %654 = vset.pattern.permute.xlu0 2
  %655 = vperm.xlu0 %654, %v34
  %v656 = vpop.permute.xlu0 %655
  %658 = vset.pattern.permute.xlu0 2
  %659 = vperm.xlu0 %658, %v35
  %v660 = vpop.permute.xlu0 %659
  %v662 = vmul.f32 %v650, %v656
  %v663 = vmul.f32 %v651, %v656
  %v664 = vmul.f32 %v652, %v660
  %v665 = vmul.f32 %v653, %v660
  %vm666 = vcmask 23552
  %667 = vst.msk [vmem:[%s7] sm:$0xff] %vm666, %v662
  %668 = vst.msk [vmem:[%s7 + $0x8] sm:$0xff] %vm666, %v663
  %669 = vst.msk [vmem:[%s7 + $0x10] sm:$0xff] %vm666, %v664
  %670 = vst.msk [vmem:[%s7 + $0x18] sm:$0xff] %vm666, %v665
  // Predicated region
  $region30: #{tpu_custom_call.1} parent=0 // pred_check
    _
  $region31: #{tpu_custom_call.1} parent=0 // pred_check_branch
    %672 = sbr.rel (0) target = $region33
  $region32: #{tpu_custom_call.1} parent=0 // pred_region
    _
  $region33: #{tpu_custom_call.1} parent=0 // pred_fallthru
    _
  // Predicated region
  $region34: #{tpu_custom_call.1} parent=0 // pred_check
    _
  $region35: #{tpu_custom_call.1} parent=0 // pred_check_branch
    %674 = sbr.rel (0) target = $region37
  $region36: #{tpu_custom_call.1} parent=0 // pred_region
    _
  $region37: #{tpu_custom_call.1} parent=0 // pred_fallthru
    _

</llo_original>
